<compile_context>
chip_gen: v7x
topology: tpu7x:2x2x1
jax: 0.10.0
libtpu: 0.0.40
codegen_flags: <defaults>
</compile_context>

<pallas_src>
import functools

import jax
import jax.numpy as jnp
from jax.experimental import pallas as pl
from jax.experimental.pallas import tpu as pltpu

_EPS = 1e-5  # PyTorch BatchNorm2d default


# ----------------------------- fused kernel -----------------------------

def _bottleneck_kernel(x_ref, w1_ref, b1_ref, a1_ref, w2_ref, b2_ref, a2_ref,
                       w3_ref, b3_ref, o_ref, hpad_ref, gsel_ref, *,
                       H, W, stride, connect):
    """Fused 1x1conv+BN+PReLU -> dw3x3+BN+PReLU -> 1x1conv+BN (+res) per image.

    Layout: channels on sublanes, flattened spatial on lanes.
      x_ref    (1, Cin,  H*W)     w1_ref (Chid, Cin)   b1/a1 (Chid, 1)
      w2_ref   (Chid, 9)          b2/a2 (Chid, 1)
      w3_ref   (Cout, Chid)       b3    (Cout, 1)
      o_ref    (1, Cout, Ho*Wo)
      hpad_ref (Chid, (H+2)*(W+2)+8)  VMEM scratch: zero-padded hidden, flat
      gsel_ref (Chid, Ho*Wo)          VMEM scratch: stride-selected dw output
    """
    f32 = jnp.float32
    Hp, Wp = H + 2, W + 2
    Ho = (H - 1) // stride + 1
    Wo = (W - 1) // stride + 1
    L = H * Wp  # full-resolution dw output length in the flat (junk-col) layout

    # ---- stage 1: 1x1 conv (BN scale folded) + bias + PReLU, lane-dense ----
    x = x_ref[0]                                                  # (Cin, H*W)
    h = jnp.dot(w1_ref[...], x, preferred_element_type=f32)       # (Chid, H*W)
    h = h + b1_ref[...]
    h = jnp.where(h > 0, h, h * a1_ref[...])

    # ---- build the zero-padded hidden image in VMEM (no HBM pad pass) ----
    hpad_ref[...] = jnp.zeros_like(hpad_ref)
    for y in range(H):  # contiguous (Chid, W) row copies, VMEM-only
        hpad_ref[:, pl.ds((y + 1) * Wp + 1, W)] = h[:, y * W:(y + 1) * W]

    # ---- stage 2: depthwise 3x3 (BN folded) + bias + PReLU ----
    # Full-resolution output in the flat layout: column j = y*Wp + x is valid
    # for x < W; columns W..Wp-1 of each row are junk and never selected below.
    acc = None
    for dy in range(3):
        for dx in range(3):
            k = dy * 3 + dx
            tap = w2_ref[:, pl.ds(k, 1)] * hpad_ref[:, pl.ds(dy * Wp + dx, L)]
            acc = tap if acc is None else acc + tap
    g = acc + b2_ref[...]
    g = jnp.where(g > 0, g, g * a2_ref[...])                      # (Chid, H*Wp)

    # ---- stride selection: contiguous row slices; columns via one-hot matmul ----
    if stride == 1:
        for y in range(H):
            gsel_ref[:, pl.ds(y * W, W)] = g[:, y * Wp:y * Wp + W]
    else:
        sel = (jax.lax.broadcasted_iota(jnp.int32, (W, Wo), 0)
               == stride * jax.lax.broadcasted_iota(jnp.int32, (W, Wo), 1)
               ).astype(f32)                                      # exact one-hot
        for yo in range(Ho):
            row = g[:, (stride * yo) * Wp:(stride * yo) * Wp + W]  # (Chid, W)
            gsel_ref[:, pl.ds(yo * Wo, Wo)] = jnp.dot(
                row, sel, preferred_element_type=f32)

    # ---- stage 3: 1x1 conv (BN folded) + bias (+ residual), lane-dense store ----
    out = jnp.dot(w3_ref[...], gsel_ref[...], preferred_element_type=f32)
    out = out + b3_ref[...]
    if connect:
        out = out + x                               # (Cout, Ho*Wo) == (Cin, H*W)
    o_ref[0] = out


# ----------------------------- wrapper -----------------------------

def bottleneck_forward(x, p, stride):
    """Bottleneck(inp, oup, stride, expansion) forward. x: (N, Cin, H, W) NCHW."""
    N, cin, H, W = x.shape
    chid = p["w1"].shape[0]
    cout = p["w3"].shape[0]
    connect = (stride == 1 and cin == cout)
    Ho = (H - 1) // stride + 1
    Wo = (W - 1) // stride + 1
    Hp, Wp = H + 2, W + 2
    flat = Hp * Wp + 8

    f32 = jnp.float32
    # Fold BN scale into conv weights at trace time; kernel only adds a bias.
    s1 = p["g1"] * jax.lax.rsqrt(p["v1"] + _EPS)
    s2 = p["g2"] * jax.lax.rsqrt(p["v2"] + _EPS)
    s3 = p["g3"] * jax.lax.rsqrt(p["v3"] + _EPS)
    w1f = (p["w1"] * s1[:, None]).astype(f32)                      # (Chid, Cin)
    w2f = (p["w2"] * s2[:, None, None]).reshape(chid, 9).astype(f32)
    w3f = (p["w3"] * s3[:, None]).astype(f32)                      # (Cout, Chid)
    b1f = (p["b1"] - p["m1"] * s1).reshape(chid, 1).astype(f32)
    b2f = (p["b2"] - p["m2"] * s2).reshape(chid, 1).astype(f32)
    b3f = (p["b3"] - p["m3"] * s3).reshape(cout, 1).astype(f32)
    a1 = p["a1"].reshape(chid, 1).astype(f32)
    a2 = p["a2"].reshape(chid, 1).astype(f32)

    x_flat = x.reshape(N, cin, H * W)  # NCHW is already channel-major: free reshape

    kernel = functools.partial(_bottleneck_kernel, H=H, W=W,
                               stride=stride, connect=connect)
    full = lambda n: (0, 0)
    out = pl.pallas_call(
        kernel,
        grid=(N,),
        in_specs=[
            pl.BlockSpec((1, cin, H * W), lambda n: (n, 0, 0)),
            pl.BlockSpec((chid, cin), full),
            pl.BlockSpec((chid, 1), full),
            pl.BlockSpec((chid, 1), full),
            pl.BlockSpec((chid, 9), full),
            pl.BlockSpec((chid, 1), full),
            pl.BlockSpec((chid, 1), full),
            pl.BlockSpec((cout, chid), full),
            pl.BlockSpec((cout, 1), full),
        ],
        out_specs=pl.BlockSpec((1, cout, Ho * Wo), lambda n: (n, 0, 0)),
        out_shape=jax.ShapeDtypeStruct((N, cout, Ho * Wo), f32),
        scratch_shapes=[pltpu.VMEM((chid, flat), f32),
                        pltpu.VMEM((chid, Ho * Wo), f32)],
        compiler_params=pltpu.CompilerParams(
            dimension_semantics=("parallel",)),
    )(x_flat, w1f, b1f, a1, w2f, b2f, a2, w3f, b3f)
    return out.reshape(N, cout, Ho, Wo)


# ------------------- pure-JAX reference (validation only) -------------------

def _ref_forward(x, p, stride, connect):
    chid = p["w1"].shape[0]
    hp = jax.lax.Precision.HIGHEST

    def bn(y, g, b, m, v):
        s = g * jax.lax.rsqrt(v + _EPS)
        return y * s[None, :, None, None] + (b - m * s)[None, :, None, None]

    def prelu(y, a):
        return jnp.where(y > 0, y, y * a[None, :, None, None])

    dn = ("NCHW", "OIHW", "NCHW")
    h = jax.lax.conv_general_dilated(x, p["w1"][:, :, None, None], (1, 1),
                                     "VALID", dimension_numbers=dn, precision=hp)
    h = prelu(bn(h, p["g1"], p["b1"], p["m1"], p["v1"]), p["a1"])
    h = jax.lax.conv_general_dilated(h, p["w2"][:, None, :, :], (stride, stride),
                                     ((1, 1), (1, 1)), dimension_numbers=dn,
                                     feature_group_count=chid, precision=hp)
    h = prelu(bn(h, p["g2"], p["b2"], p["m2"], p["v2"]), p["a2"])
    h = jax.lax.conv_general_dilated(h, p["w3"][:, :, None, None], (1, 1),
                                     "VALID", dimension_numbers=dn, precision=hp)
    h = bn(h, p["g3"], p["b3"], p["m3"], p["v3"])
    if connect:
        h = h + x
    return h


# ----------------------------- demo -----------------------------

def _make_bottleneck_params(key, inp, oup, expansion):
    chid = inp * expansion
    ks = jax.random.split(key, 17)
    f32 = jnp.float32
    u = lambda k, shape, lo, hi: jax.random.uniform(k, shape, f32, lo, hi)
    nrm = lambda k, shape: 0.1 * jax.random.normal(k, shape, f32)
    return {
        # 1x1 conv (Chid, Cin) + BN(chid) + PReLU(chid)
        "w1": nrm(ks[0], (chid, inp)),
        "g1": u(ks[1], (chid,), 0.5, 1.5), "b1": nrm(ks[2], (chid,)),
        "m1": nrm(ks[3], (chid,)), "v1": u(ks[4], (chid,), 0.5, 1.5),
        "a1": u(ks[5], (chid,), 0.1, 0.4),
        # depthwise 3x3 (Chid, 3, 3) + BN(chid) + PReLU(chid)
        "w2": nrm(ks[6], (chid, 3, 3)),
        "g2": u(ks[7], (chid,), 0.5, 1.5), "b2": nrm(ks[8], (chid,)),
        "m2": nrm(ks[9], (chid,)), "v2": u(ks[10], (chid,), 0.5, 1.5),
        "a2": u(ks[11], (chid,), 0.1, 0.4),
        # 1x1 conv (Cout, Chid) + BN(oup)
        "w3": nrm(ks[12], (oup, chid)),
        "g3": u(ks[13], (oup,), 0.5, 1.5), "b3": nrm(ks[14], (oup,)),
        "m3": nrm(ks[15], (oup,)), "v3": u(ks[16], (oup,), 0.5, 1.5),
    }


if __name__ == "__main__":
    N, inp, oup, H, W = 2, 4, 4, 16, 16
    expansion = 2
    k0, k1, k2 = jax.random.split(jax.random.PRNGKey(0), 3)
    pA = _make_bottleneck_params(k0, inp, oup, expansion)
    pB = _make_bottleneck_params(k1, inp, oup, expansion)
    x = jax.random.normal(k2, (N, inp, H, W), jnp.float32)

    # stride=1 bottleneck with residual (the repeated blocks of each setting)
    y1 = jax.block_until_ready(bottleneck_forward(x, pA, stride=1))
    r1 = _ref_forward(x, pA, 1, True)
    assert y1.shape == (N, oup, H, W), y1.shape
    assert jnp.allclose(y1, r1, atol=1e-4, rtol=1e-4), "stride-1 mismatch"

    # stride=2 bottleneck (the downsampling first block of a setting)
    y2 = jax.block_until_ready(bottleneck_forward(x, pB, stride=2))
    r2 = _ref_forward(x, pB, 2, False)
    assert y2.shape == (N, oup, H // 2, W // 2), y2.shape
    assert jnp.allclose(y2, r2, atol=1e-4, rtol=1e-4), "stride-2 mismatch"

    # stacked as in _make_layer(Bottleneck, ...): stride-2 then stride-1 residual
    y3 = jax.block_until_ready(bottleneck_forward(y2, pA, stride=1))
    r3 = _ref_forward(r2, pA, 1, True)
    assert jnp.allclose(y3, r3, atol=1e-4, rtol=1e-4), "stacked mismatch"

    print("KERNEL_OK")
</pallas_src>

<mosaic_0001>
module attributes {stable_mosaic.version = 11 : i64} {
  func.func @_bottleneck_kernel(%arg0: i32, %arg1: memref<1x4x256xf32, #tpu.memory_space<vmem>>, %arg2: memref<8x4xf32, #tpu.memory_space<vmem>>, %arg3: memref<8x1xf32, #tpu.memory_space<vmem>>, %arg4: memref<8x1xf32, #tpu.memory_space<vmem>>, %arg5: memref<8x9xf32, #tpu.memory_space<vmem>>, %arg6: memref<8x1xf32, #tpu.memory_space<vmem>>, %arg7: memref<8x1xf32, #tpu.memory_space<vmem>>, %arg8: memref<4x8xf32, #tpu.memory_space<vmem>>, %arg9: memref<4x1xf32, #tpu.memory_space<vmem>>, %arg10: memref<1x4x256xf32, #tpu.memory_space<vmem>>, %arg11: memref<8x332xf32, #tpu.memory_space<vmem>>, %arg12: memref<8x256xf32, #tpu.memory_space<vmem>>) attributes {dimension_semantics = [#tpu.dimension_semantics<parallel>], iteration_bounds = array<i64: 2>, scalar_prefetch = 0 : i64, scratch_operands = 2 : i64, tpu.core_type = #tpu.core_type<tc>, window_params = [{transform_indices = @transform_0, window_bounds = array<i64: 1, 4, 256>}, {pipeline_mode = #tpu.pipeline_mode<synchronous>, transform_indices = @transform_1, window_bounds = array<i64: 8, 4>}, {pipeline_mode = #tpu.pipeline_mode<synchronous>, transform_indices = @transform_2, window_bounds = array<i64: 8, 1>}, {pipeline_mode = #tpu.pipeline_mode<synchronous>, transform_indices = @transform_3, window_bounds = array<i64: 8, 1>}, {pipeline_mode = #tpu.pipeline_mode<synchronous>, transform_indices = @transform_4, window_bounds = array<i64: 8, 9>}, {pipeline_mode = #tpu.pipeline_mode<synchronous>, transform_indices = @transform_5, window_bounds = array<i64: 8, 1>}, {pipeline_mode = #tpu.pipeline_mode<synchronous>, transform_indices = @transform_6, window_bounds = array<i64: 8, 1>}, {pipeline_mode = #tpu.pipeline_mode<synchronous>, transform_indices = @transform_7, window_bounds = array<i64: 4, 8>}, {pipeline_mode = #tpu.pipeline_mode<synchronous>, transform_indices = @transform_8, window_bounds = array<i64: 4, 1>}, {transform_indices = @transform_9, window_bounds = array<i64: 1, 4, 256>}]} {
    %c0 = arith.constant 0 : index
    %c0_0 = arith.constant 0 : index
    %c0_1 = arith.constant 0 : index
    %0 = vector.load %arg1[%c0, %c0_0, %c0_1] : memref<1x4x256xf32, #tpu.memory_space<vmem>>, vector<1x4x256xf32>
    %1 = vector.shape_cast %0 : vector<1x4x256xf32> to vector<4x256xf32>
    %c0_2 = arith.constant 0 : index
    %c0_3 = arith.constant 0 : index
    %2 = vector.load %arg2[%c0_2, %c0_3] : memref<8x4xf32, #tpu.memory_space<vmem>>, vector<8x4xf32>
    %cst = arith.constant dense<0.000000e+00> : vector<8x256xf32>
    %3 = tpu.matmul %2, %1, %cst {dimension_numbers = #tpu.dot_dimension_numbers<[1], [0], [0], [1], [0, 0, 1, 1], [], []>} : vector<8x4xf32>, vector<4x256xf32>, vector<8x256xf32> -> vector<8x256xf32>
    %c0_4 = arith.constant 0 : index
    %c0_5 = arith.constant 0 : index
    %4 = vector.load %arg3[%c0_4, %c0_5] : memref<8x1xf32, #tpu.memory_space<vmem>>, vector<8x1xf32>
    %5 = vector.broadcast %4 : vector<8x1xf32> to vector<8x256xf32>
    %6 = arith.addf %3, %5 : vector<8x256xf32>
    %cst_6 = arith.constant 0.000000e+00 : f32
    %7 = vector.broadcast %cst_6 : f32 to vector<8x256xf32>
    %8 = arith.cmpf ogt, %6, %7 : vector<8x256xf32>
    %c0_7 = arith.constant 0 : index
    %c0_8 = arith.constant 0 : index
    %9 = vector.load %arg4[%c0_7, %c0_8] : memref<8x1xf32, #tpu.memory_space<vmem>>, vector<8x1xf32>
    %10 = vector.broadcast %9 : vector<8x1xf32> to vector<8x256xf32>
    %11 = arith.mulf %6, %10 : vector<8x256xf32>
    %12 = arith.select %8, %6, %11 : vector<8x256xi1>, vector<8x256xf32>
    %cst_9 = arith.constant 0.000000e+00 : f32
    %13 = vector.broadcast %cst_9 : f32 to vector<8x332xf32>
    %c0_10 = arith.constant 0 : index
    %c0_11 = arith.constant 0 : index
    %14 = vector.load %arg11[%c0_10, %c0_11] : memref<8x332xf32, #tpu.memory_space<vmem>>, vector<8x332xf32>
    tpu.vector_store %arg11[%c0_10, %c0_11], %13 {strides = array<i32>} : memref<8x332xf32, #tpu.memory_space<vmem>>, vector<8x332xf32>,
    %15 = vector.extract_strided_slice %12 {offsets = [0, 0], sizes = [8, 16], strides = [1, 1]} : vector<8x256xf32> to vector<8x16xf32>
    %c0_12 = arith.constant 0 : index
    %c19 = arith.constant 19 : index
    %16 = vector.load %arg11[%c0_12, %c19] : memref<8x332xf32, #tpu.memory_space<vmem>>, vector<8x16xf32>
    tpu.vector_store %arg11[%c0_12, %c19], %15 {strides = array<i32>} : memref<8x332xf32, #tpu.memory_space<vmem>>, vector<8x16xf32>,
    %17 = vector.extract_strided_slice %12 {offsets = [0, 16], sizes = [8, 16], strides = [1, 1]} : vector<8x256xf32> to vector<8x16xf32>
    %c0_13 = arith.constant 0 : index
    %c37 = arith.constant 37 : index
    %18 = vector.load %arg11[%c0_13, %c37] : memref<8x332xf32, #tpu.memory_space<vmem>>, vector<8x16xf32>
    tpu.vector_store %arg11[%c0_13, %c37], %17 {strides = array<i32>} : memref<8x332xf32, #tpu.memory_space<vmem>>, vector<8x16xf32>,
    %19 = vector.extract_strided_slice %12 {offsets = [0, 32], sizes = [8, 16], strides = [1, 1]} : vector<8x256xf32> to vector<8x16xf32>
    %c0_14 = arith.constant 0 : index
    %c55 = arith.constant 55 : index
    %20 = vector.load %arg11[%c0_14, %c55] : memref<8x332xf32, #tpu.memory_space<vmem>>, vector<8x16xf32>
    tpu.vector_store %arg11[%c0_14, %c55], %19 {strides = array<i32>} : memref<8x332xf32, #tpu.memory_space<vmem>>, vector<8x16xf32>,
    %21 = vector.extract_strided_slice %12 {offsets = [0, 48], sizes = [8, 16], strides = [1, 1]} : vector<8x256xf32> to vector<8x16xf32>
    %c0_15 = arith.constant 0 : index
    %c73 = arith.constant 73 : index
    %22 = vector.load %arg11[%c0_15, %c73] : memref<8x332xf32, #tpu.memory_space<vmem>>, vector<8x16xf32>
    tpu.vector_store %arg11[%c0_15, %c73], %21 {strides = array<i32>} : memref<8x332xf32, #tpu.memory_space<vmem>>, vector<8x16xf32>,
    %23 = vector.extract_strided_slice %12 {offsets = [0, 64], sizes = [8, 16], strides = [1, 1]} : vector<8x256xf32> to vector<8x16xf32>
    %c0_16 = arith.constant 0 : index
    %c91 = arith.constant 91 : index
    %24 = vector.load %arg11[%c0_16, %c91] : memref<8x332xf32, #tpu.memory_space<vmem>>, vector<8x16xf32>
    tpu.vector_store %arg11[%c0_16, %c91], %23 {strides = array<i32>} : memref<8x332xf32, #tpu.memory_space<vmem>>, vector<8x16xf32>,
    %25 = vector.extract_strided_slice %12 {offsets = [0, 80], sizes = [8, 16], strides = [1, 1]} : vector<8x256xf32> to vector<8x16xf32>
    %c0_17 = arith.constant 0 : index
    %c109 = arith.constant 109 : index
    %26 = vector.load %arg11[%c0_17, %c109] : memref<8x332xf32, #tpu.memory_space<vmem>>, vector<8x16xf32>
    tpu.vector_store %arg11[%c0_17, %c109], %25 {strides = array<i32>} : memref<8x332xf32, #tpu.memory_space<vmem>>, vector<8x16xf32>,
    %27 = vector.extract_strided_slice %12 {offsets = [0, 96], sizes = [8, 16], strides = [1, 1]} : vector<8x256xf32> to vector<8x16xf32>
    %c0_18 = arith.constant 0 : index
    %c127 = arith.constant 127 : index
    %28 = vector.load %arg11[%c0_18, %c127] : memref<8x332xf32, #tpu.memory_space<vmem>>, vector<8x16xf32>
    tpu.vector_store %arg11[%c0_18, %c127], %27 {strides = array<i32>} : memref<8x332xf32, #tpu.memory_space<vmem>>, vector<8x16xf32>,
    %29 = vector.extract_strided_slice %12 {offsets = [0, 112], sizes = [8, 16], strides = [1, 1]} : vector<8x256xf32> to vector<8x16xf32>
    %c0_19 = arith.constant 0 : index
    %c145 = arith.constant 145 : index
    %30 = vector.load %arg11[%c0_19, %c145] : memref<8x332xf32, #tpu.memory_space<vmem>>, vector<8x16xf32>
    tpu.vector_store %arg11[%c0_19, %c145], %29 {strides = array<i32>} : memref<8x332xf32, #tpu.memory_space<vmem>>, vector<8x16xf32>,
    %31 = vector.extract_strided_slice %12 {offsets = [0, 128], sizes = [8, 16], strides = [1, 1]} : vector<8x256xf32> to vector<8x16xf32>
    %c0_20 = arith.constant 0 : index
    %c163 = arith.constant 163 : index
    %32 = vector.load %arg11[%c0_20, %c163] : memref<8x332xf32, #tpu.memory_space<vmem>>, vector<8x16xf32>
    tpu.vector_store %arg11[%c0_20, %c163], %31 {strides = array<i32>} : memref<8x332xf32, #tpu.memory_space<vmem>>, vector<8x16xf32>,
    %33 = vector.extract_strided_slice %12 {offsets = [0, 144], sizes = [8, 16], strides = [1, 1]} : vector<8x256xf32> to vector<8x16xf32>
    %c0_21 = arith.constant 0 : index
    %c181 = arith.constant 181 : index
    %34 = vector.load %arg11[%c0_21, %c181] : memref<8x332xf32, #tpu.memory_space<vmem>>, vector<8x16xf32>
    tpu.vector_store %arg11[%c0_21, %c181], %33 {strides = array<i32>} : memref<8x332xf32, #tpu.memory_space<vmem>>, vector<8x16xf32>,
    %35 = vector.extract_strided_slice %12 {offsets = [0, 160], sizes = [8, 16], strides = [1, 1]} : vector<8x256xf32> to vector<8x16xf32>
    %c0_22 = arith.constant 0 : index
    %c199 = arith.constant 199 : index
    %36 = vector.load %arg11[%c0_22, %c199] : memref<8x332xf32, #tpu.memory_space<vmem>>, vector<8x16xf32>
    tpu.vector_store %arg11[%c0_22, %c199], %35 {strides = array<i32>} : memref<8x332xf32, #tpu.memory_space<vmem>>, vector<8x16xf32>,
    %37 = vector.extract_strided_slice %12 {offsets = [0, 176], sizes = [8, 16], strides = [1, 1]} : vector<8x256xf32> to vector<8x16xf32>
    %c0_23 = arith.constant 0 : index
    %c217 = arith.constant 217 : index
    %38 = vector.load %arg11[%c0_23, %c217] : memref<8x332xf32, #tpu.memory_space<vmem>>, vector<8x16xf32>
    tpu.vector_store %arg11[%c0_23, %c217], %37 {strides = array<i32>} : memref<8x332xf32, #tpu.memory_space<vmem>>, vector<8x16xf32>,
    %39 = vector.extract_strided_slice %12 {offsets = [0, 192], sizes = [8, 16], strides = [1, 1]} : vector<8x256xf32> to vector<8x16xf32>
    %c0_24 = arith.constant 0 : index
    %c235 = arith.constant 235 : index
    %40 = vector.load %arg11[%c0_24, %c235] : memref<8x332xf32, #tpu.memory_space<vmem>>, vector<8x16xf32>
    tpu.vector_store %arg11[%c0_24, %c235], %39 {strides = array<i32>} : memref<8x332xf32, #tpu.memory_space<vmem>>, vector<8x16xf32>,
    %41 = vector.extract_strided_slice %12 {offsets = [0, 208], sizes = [8, 16], strides = [1, 1]} : vector<8x256xf32> to vector<8x16xf32>
    %c0_25 = arith.constant 0 : index
    %c253 = arith.constant 253 : index
    %42 = vector.load %arg11[%c0_25, %c253] : memref<8x332xf32, #tpu.memory_space<vmem>>, vector<8x16xf32>
    tpu.vector_store %arg11[%c0_25, %c253], %41 {strides = array<i32>} : memref<8x332xf32, #tpu.memory_space<vmem>>, vector<8x16xf32>,
    %43 = vector.extract_strided_slice %12 {offsets = [0, 224], sizes = [8, 16], strides = [1, 1]} : vector<8x256xf32> to vector<8x16xf32>
    %c0_26 = arith.constant 0 : index
    %c271 = arith.constant 271 : index
    %44 = vector.load %arg11[%c0_26, %c271] : memref<8x332xf32, #tpu.memory_space<vmem>>, vector<8x16xf32>
    tpu.vector_store %arg11[%c0_26, %c271], %43 {strides = array<i32>} : memref<8x332xf32, #tpu.memory_space<vmem>>, vector<8x16xf32>,
    %45 = vector.extract_strided_slice %12 {offsets = [0, 240], sizes = [8, 16], strides = [1, 1]} : vector<8x256xf32> to vector<8x16xf32>
    %c0_27 = arith.constant 0 : index
    %c289 = arith.constant 289 : index
    %46 = vector.load %arg11[%c0_27, %c289] : memref<8x332xf32, #tpu.memory_space<vmem>>, vector<8x16xf32>
    tpu.vector_store %arg11[%c0_27, %c289], %45 {strides = array<i32>} : memref<8x332xf32, #tpu.memory_space<vmem>>, vector<8x16xf32>,
    %c0_28 = arith.constant 0 : index
    %c0_29 = arith.constant 0 : index
    %47 = vector.load %arg5[%c0_28, %c0_29] : memref<8x9xf32, #tpu.memory_space<vmem>>, vector<8x1xf32>
    %c0_30 = arith.constant 0 : index
    %c0_31 = arith.constant 0 : index
    %48 = vector.load %arg11[%c0_30, %c0_31] : memref<8x332xf32, #tpu.memory_space<vmem>>, vector<8x288xf32>
    %49 = vector.broadcast %47 : vector<8x1xf32> to vector<8x288xf32>
    %50 = arith.mulf %49, %48 : vector<8x288xf32>
    %c0_32 = arith.constant 0 : index
    %c1 = arith.constant 1 : index
    %51 = vector.load %arg5[%c0_32, %c1] : memref<8x9xf32, #tpu.memory_space<vmem>>, vector<8x1xf32>
    %c0_33 = arith.constant 0 : index
    %c1_34 = arith.constant 1 : index
    %52 = vector.load %arg11[%c0_33, %c1_34] : memref<8x332xf32, #tpu.memory_space<vmem>>, vector<8x288xf32>
    %53 = vector.broadcast %51 : vector<8x1xf32> to vector<8x288xf32>
    %54 = arith.mulf %53, %52 : vector<8x288xf32>
    %55 = arith.addf %50, %54 : vector<8x288xf32>
    %c0_35 = arith.constant 0 : index
    %c2 = arith.constant 2 : index
    %56 = vector.load %arg5[%c0_35, %c2] : memref<8x9xf32, #tpu.memory_space<vmem>>, vector<8x1xf32>
    %c0_36 = arith.constant 0 : index
    %c2_37 = arith.constant 2 : index
    %57 = vector.load %arg11[%c0_36, %c2_37] : memref<8x332xf32, #tpu.memory_space<vmem>>, vector<8x288xf32>
    %58 = vector.broadcast %56 : vector<8x1xf32> to vector<8x288xf32>
    %59 = arith.mulf %58, %57 : vector<8x288xf32>
    %60 = arith.addf %55, %59 : vector<8x288xf32>
    %c0_38 = arith.constant 0 : index
    %c3 = arith.constant 3 : index
    %61 = vector.load %arg5[%c0_38, %c3] : memref<8x9xf32, #tpu.memory_space<vmem>>, vector<8x1xf32>
    %c0_39 = arith.constant 0 : index
    %c18 = arith.constant 18 : index
    %62 = vector.load %arg11[%c0_39, %c18] : memref<8x332xf32, #tpu.memory_space<vmem>>, vector<8x288xf32>
    %63 = vector.broadcast %61 : vector<8x1xf32> to vector<8x288xf32>
    %64 = arith.mulf %63, %62 : vector<8x288xf32>
    %65 = arith.addf %60, %64 : vector<8x288xf32>
    %c0_40 = arith.constant 0 : index
    %c4 = arith.constant 4 : index
    %66 = vector.load %arg5[%c0_40, %c4] : memref<8x9xf32, #tpu.memory_space<vmem>>, vector<8x1xf32>
    %c0_41 = arith.constant 0 : index
    %c19_42 = arith.constant 19 : index
    %67 = vector.load %arg11[%c0_41, %c19_42] : memref<8x332xf32, #tpu.memory_space<vmem>>, vector<8x288xf32>
    %68 = vector.broadcast %66 : vector<8x1xf32> to vector<8x288xf32>
    %69 = arith.mulf %68, %67 : vector<8x288xf32>
    %70 = arith.addf %65, %69 : vector<8x288xf32>
    %c0_43 = arith.constant 0 : index
    %c5 = arith.constant 5 : index
    %71 = vector.load %arg5[%c0_43, %c5] : memref<8x9xf32, #tpu.memory_space<vmem>>, vector<8x1xf32>
    %c0_44 = arith.constant 0 : index
    %c20 = arith.constant 20 : index
    %72 = vector.load %arg11[%c0_44, %c20] : memref<8x332xf32, #tpu.memory_space<vmem>>, vector<8x288xf32>
    %73 = vector.broadcast %71 : vector<8x1xf32> to vector<8x288xf32>
    %74 = arith.mulf %73, %72 : vector<8x288xf32>
    %75 = arith.addf %70, %74 : vector<8x288xf32>
    %c0_45 = arith.constant 0 : index
    %c6 = arith.constant 6 : index
    %76 = vector.load %arg5[%c0_45, %c6] : memref<8x9xf32, #tpu.memory_space<vmem>>, vector<8x1xf32>
    %c0_46 = arith.constant 0 : index
    %c36 = arith.constant 36 : index
    %77 = vector.load %arg11[%c0_46, %c36] : memref<8x332xf32, #tpu.memory_space<vmem>>, vector<8x288xf32>
    %78 = vector.broadcast %76 : vector<8x1xf32> to vector<8x288xf32>
    %79 = arith.mulf %78, %77 : vector<8x288xf32>
    %80 = arith.addf %75, %79 : vector<8x288xf32>
    %c0_47 = arith.constant 0 : index
    %c7 = arith.constant 7 : index
    %81 = vector.load %arg5[%c0_47, %c7] : memref<8x9xf32, #tpu.memory_space<vmem>>, vector<8x1xf32>
    %c0_48 = arith.constant 0 : index
    %c37_49 = arith.constant 37 : index
    %82 = vector.load %arg11[%c0_48, %c37_49] : memref<8x332xf32, #tpu.memory_space<vmem>>, vector<8x288xf32>
    %83 = vector.broadcast %81 : vector<8x1xf32> to vector<8x288xf32>
    %84 = arith.mulf %83, %82 : vector<8x288xf32>
    %85 = arith.addf %80, %84 : vector<8x288xf32>
    %c0_50 = arith.constant 0 : index
    %c8 = arith.constant 8 : index
    %86 = vector.load %arg5[%c0_50, %c8] : memref<8x9xf32, #tpu.memory_space<vmem>>, vector<8x1xf32>
    %c0_51 = arith.constant 0 : index
    %c38 = arith.constant 38 : index
    %87 = vector.load %arg11[%c0_51, %c38] : memref<8x332xf32, #tpu.memory_space<vmem>>, vector<8x288xf32>
    %88 = vector.broadcast %86 : vector<8x1xf32> to vector<8x288xf32>
    %89 = arith.mulf %88, %87 : vector<8x288xf32>
    %90 = arith.addf %85, %89 : vector<8x288xf32>
    %c0_52 = arith.constant 0 : index
    %c0_53 = arith.constant 0 : index
    %91 = vector.load %arg6[%c0_52, %c0_53] : memref<8x1xf32, #tpu.memory_space<vmem>>, vector<8x1xf32>
    %92 = vector.broadcast %91 : vector<8x1xf32> to vector<8x288xf32>
    %93 = arith.addf %90, %92 : vector<8x288xf32>
    %cst_54 = arith.constant 0.000000e+00 : f32
    %94 = vector.broadcast %cst_54 : f32 to vector<8x288xf32>
    %95 = arith.cmpf ogt, %93, %94 : vector<8x288xf32>
    %c0_55 = arith.constant 0 : index
    %c0_56 = arith.constant 0 : index
    %96 = vector.load %arg7[%c0_55, %c0_56] : memref<8x1xf32, #tpu.memory_space<vmem>>, vector<8x1xf32>
    %97 = vector.broadcast %96 : vector<8x1xf32> to vector<8x288xf32>
    %98 = arith.mulf %93, %97 : vector<8x288xf32>
    %99 = arith.select %95, %93, %98 : vector<8x288xi1>, vector<8x288xf32>
    %100 = vector.extract_strided_slice %99 {offsets = [0, 0], sizes = [8, 16], strides = [1, 1]} : vector<8x288xf32> to vector<8x16xf32>
    %c0_57 = arith.constant 0 : index
    %c0_58 = arith.constant 0 : index
    %101 = vector.load %arg12[%c0_57, %c0_58] : memref<8x256xf32, #tpu.memory_space<vmem>>, vector<8x16xf32>
    tpu.vector_store %arg12[%c0_57, %c0_58], %100 {strides = array<i32>} : memref<8x256xf32, #tpu.memory_space<vmem>>, vector<8x16xf32>,
    %102 = vector.extract_strided_slice %99 {offsets = [0, 18], sizes = [8, 16], strides = [1, 1]} : vector<8x288xf32> to vector<8x16xf32>
    %c0_59 = arith.constant 0 : index
    %c16 = arith.constant 16 : index
    %103 = vector.load %arg12[%c0_59, %c16] : memref<8x256xf32, #tpu.memory_space<vmem>>, vector<8x16xf32>
    tpu.vector_store %arg12[%c0_59, %c16], %102 {strides = array<i32>} : memref<8x256xf32, #tpu.memory_space<vmem>>, vector<8x16xf32>,
    %104 = vector.extract_strided_slice %99 {offsets = [0, 36], sizes = [8, 16], strides = [1, 1]} : vector<8x288xf32> to vector<8x16xf32>
    %c0_60 = arith.constant 0 : index
    %c32 = arith.constant 32 : index
    %105 = vector.load %arg12[%c0_60, %c32] : memref<8x256xf32, #tpu.memory_space<vmem>>, vector<8x16xf32>
    tpu.vector_store %arg12[%c0_60, %c32], %104 {strides = array<i32>} : memref<8x256xf32, #tpu.memory_space<vmem>>, vector<8x16xf32>,
    %106 = vector.extract_strided_slice %99 {offsets = [0, 54], sizes = [8, 16], strides = [1, 1]} : vector<8x288xf32> to vector<8x16xf32>
    %c0_61 = arith.constant 0 : index
    %c48 = arith.constant 48 : index
    %107 = vector.load %arg12[%c0_61, %c48] : memref<8x256xf32, #tpu.memory_space<vmem>>, vector<8x16xf32>
    tpu.vector_store %arg12[%c0_61, %c48], %106 {strides = array<i32>} : memref<8x256xf32, #tpu.memory_space<vmem>>, vector<8x16xf32>,
    %108 = vector.extract_strided_slice %99 {offsets = [0, 72], sizes = [8, 16], strides = [1, 1]} : vector<8x288xf32> to vector<8x16xf32>
    %c0_62 = arith.constant 0 : index
    %c64 = arith.constant 64 : index
    %109 = vector.load %arg12[%c0_62, %c64] : memref<8x256xf32, #tpu.memory_space<vmem>>, vector<8x16xf32>
    tpu.vector_store %arg12[%c0_62, %c64], %108 {strides = array<i32>} : memref<8x256xf32, #tpu.memory_space<vmem>>, vector<8x16xf32>,
    %110 = vector.extract_strided_slice %99 {offsets = [0, 90], sizes = [8, 16], strides = [1, 1]} : vector<8x288xf32> to vector<8x16xf32>
    %c0_63 = arith.constant 0 : index
    %c80 = arith.constant 80 : index
    %111 = vector.load %arg12[%c0_63, %c80] : memref<8x256xf32, #tpu.memory_space<vmem>>, vector<8x16xf32>
    tpu.vector_store %arg12[%c0_63, %c80], %110 {strides = array<i32>} : memref<8x256xf32, #tpu.memory_space<vmem>>, vector<8x16xf32>,
    %112 = vector.extract_strided_slice %99 {offsets = [0, 108], sizes = [8, 16], strides = [1, 1]} : vector<8x288xf32> to vector<8x16xf32>
    %c0_64 = arith.constant 0 : index
    %c96 = arith.constant 96 : index
    %113 = vector.load %arg12[%c0_64, %c96] : memref<8x256xf32, #tpu.memory_space<vmem>>, vector<8x16xf32>
    tpu.vector_store %arg12[%c0_64, %c96], %112 {strides = array<i32>} : memref<8x256xf32, #tpu.memory_space<vmem>>, vector<8x16xf32>,
    %114 = vector.extract_strided_slice %99 {offsets = [0, 126], sizes = [8, 16], strides = [1, 1]} : vector<8x288xf32> to vector<8x16xf32>
    %c0_65 = arith.constant 0 : index
    %c112 = arith.constant 112 : index
    %115 = vector.load %arg12[%c0_65, %c112] : memref<8x256xf32, #tpu.memory_space<vmem>>, vector<8x16xf32>
    tpu.vector_store %arg12[%c0_65, %c112], %114 {strides = array<i32>} : memref<8x256xf32, #tpu.memory_space<vmem>>, vector<8x16xf32>,
    %116 = vector.extract_strided_slice %99 {offsets = [0, 144], sizes = [8, 16], strides = [1, 1]} : vector<8x288xf32> to vector<8x16xf32>
    %c0_66 = arith.constant 0 : index
    %c128 = arith.constant 128 : index
    %117 = vector.load %arg12[%c0_66, %c128] : memref<8x256xf32, #tpu.memory_space<vmem>>, vector<8x16xf32>
    tpu.vector_store %arg12[%c0_66, %c128], %116 {strides = array<i32>} : memref<8x256xf32, #tpu.memory_space<vmem>>, vector<8x16xf32>,
    %118 = vector.extract_strided_slice %99 {offsets = [0, 162], sizes = [8, 16], strides = [1, 1]} : vector<8x288xf32> to vector<8x16xf32>
    %c0_67 = arith.constant 0 : index
    %c144 = arith.constant 144 : index
    %119 = vector.load %arg12[%c0_67, %c144] : memref<8x256xf32, #tpu.memory_space<vmem>>, vector<8x16xf32>
    tpu.vector_store %arg12[%c0_67, %c144], %118 {strides = array<i32>} : memref<8x256xf32, #tpu.memory_space<vmem>>, vector<8x16xf32>,
    %120 = vector.extract_strided_slice %99 {offsets = [0, 180], sizes = [8, 16], strides = [1, 1]} : vector<8x288xf32> to vector<8x16xf32>
    %c0_68 = arith.constant 0 : index
    %c160 = arith.constant 160 : index
    %121 = vector.load %arg12[%c0_68, %c160] : memref<8x256xf32, #tpu.memory_space<vmem>>, vector<8x16xf32>
    tpu.vector_store %arg12[%c0_68, %c160], %120 {strides = array<i32>} : memref<8x256xf32, #tpu.memory_space<vmem>>, vector<8x16xf32>,
    %122 = vector.extract_strided_slice %99 {offsets = [0, 198], sizes = [8, 16], strides = [1, 1]} : vector<8x288xf32> to vector<8x16xf32>
    %c0_69 = arith.constant 0 : index
    %c176 = arith.constant 176 : index
    %123 = vector.load %arg12[%c0_69, %c176] : memref<8x256xf32, #tpu.memory_space<vmem>>, vector<8x16xf32>
    tpu.vector_store %arg12[%c0_69, %c176], %122 {strides = array<i32>} : memref<8x256xf32, #tpu.memory_space<vmem>>, vector<8x16xf32>,
    %124 = vector.extract_strided_slice %99 {offsets = [0, 216], sizes = [8, 16], strides = [1, 1]} : vector<8x288xf32> to vector<8x16xf32>
    %c0_70 = arith.constant 0 : index
    %c192 = arith.constant 192 : index
    %125 = vector.load %arg12[%c0_70, %c192] : memref<8x256xf32, #tpu.memory_space<vmem>>, vector<8x16xf32>
    tpu.vector_store %arg12[%c0_70, %c192], %124 {strides = array<i32>} : memref<8x256xf32, #tpu.memory_space<vmem>>, vector<8x16xf32>,
    %126 = vector.extract_strided_slice %99 {offsets = [0, 234], sizes = [8, 16], strides = [1, 1]} : vector<8x288xf32> to vector<8x16xf32>
    %c0_71 = arith.constant 0 : index
    %c208 = arith.constant 208 : index
    %127 = vector.load %arg12[%c0_71, %c208] : memref<8x256xf32, #tpu.memory_space<vmem>>, vector<8x16xf32>
    tpu.vector_store %arg12[%c0_71, %c208], %126 {strides = array<i32>} : memref<8x256xf32, #tpu.memory_space<vmem>>, vector<8x16xf32>,
    %128 = vector.extract_strided_slice %99 {offsets = [0, 252], sizes = [8, 16], strides = [1, 1]} : vector<8x288xf32> to vector<8x16xf32>
    %c0_72 = arith.constant 0 : index
    %c224 = arith.constant 224 : index
    %129 = vector.load %arg12[%c0_72, %c224] : memref<8x256xf32, #tpu.memory_space<vmem>>, vector<8x16xf32>
    tpu.vector_store %arg12[%c0_72, %c224], %128 {strides = array<i32>} : memref<8x256xf32, #tpu.memory_space<vmem>>, vector<8x16xf32>,
    %130 = vector.extract_strided_slice %99 {offsets = [0, 270], sizes = [8, 16], strides = [1, 1]} : vector<8x288xf32> to vector<8x16xf32>
    %c0_73 = arith.constant 0 : index
    %c240 = arith.constant 240 : index
    %131 = vector.load %arg12[%c0_73, %c240] : memref<8x256xf32, #tpu.memory_space<vmem>>, vector<8x16xf32>
    tpu.vector_store %arg12[%c0_73, %c240], %130 {strides = array<i32>} : memref<8x256xf32, #tpu.memory_space<vmem>>, vector<8x16xf32>,
    %c0_74 = arith.constant 0 : index
    %c0_75 = arith.constant 0 : index
    %132 = vector.load %arg8[%c0_74, %c0_75] : memref<4x8xf32, #tpu.memory_space<vmem>>, vector<4x8xf32>
    %c0_76 = arith.constant 0 : index
    %c0_77 = arith.constant 0 : index
    %133 = vector.load %arg12[%c0_76, %c0_77] : memref<8x256xf32, #tpu.memory_space<vmem>>, vector<8x256xf32>
    %cst_78 = arith.constant dense<0.000000e+00> : vector<4x256xf32>
    %134 = tpu.matmul %132, %133, %cst_78 {dimension_numbers = #tpu.dot_dimension_numbers<[1], [0], [0], [1], [0, 0, 1, 1], [], []>} : vector<4x8xf32>, vector<8x256xf32>, vector<4x256xf32> -> vector<4x256xf32>
    %c0_79 = arith.constant 0 : index
    %c0_80 = arith.constant 0 : index
    %135 = vector.load %arg9[%c0_79, %c0_80] : memref<4x1xf32, #tpu.memory_space<vmem>>, vector<4x1xf32>
    %136 = vector.broadcast %135 : vector<4x1xf32> to vector<4x256xf32>
    %137 = arith.addf %134, %136 : vector<4x256xf32>
    %138 = arith.addf %137, %1 : vector<4x256xf32>
    %c0_81 = arith.constant 0 : index
    %c0_82 = arith.constant 0 : index
    %c0_83 = arith.constant 0 : index
    %139 = vector.load %arg10[%c0_81, %c0_82, %c0_83] : memref<1x4x256xf32, #tpu.memory_space<vmem>>, vector<1x4x256xf32>
    %140 = vector.shape_cast %139 : vector<1x4x256xf32> to vector<4x256xf32>
    %141 = vector.shape_cast %138 : vector<4x256xf32> to vector<1x4x256xf32>
    tpu.vector_store %arg10[%c0_81, %c0_82, %c0_83], %141 {strides = array<i32>} : memref<1x4x256xf32, #tpu.memory_space<vmem>>, vector<1x4x256xf32>,
    return
  }
  func.func @transform_0(%arg0: i32) -> (i32, i32, i32) {
    %c0_i32 = arith.constant 0 : i32
    %c0_i32_0 = arith.constant 0 : i32
    %c0_i32_1 = arith.constant 0 : i32
    return %arg0, %c0_i32, %c0_i32_0 : i32, i32, i32
  }
  func.func @transform_1(%arg0: i32) -> (i32, i32) {
    %c0_i32 = arith.constant 0 : i32
    %c0_i32_0 = arith.constant 0 : i32
    %c0_i32_1 = arith.constant 0 : i32
    return %c0_i32, %c0_i32_0 : i32, i32
  }
  func.func @transform_2(%arg0: i32) -> (i32, i32) {
    %c0_i32 = arith.constant 0 : i32
    %c0_i32_0 = arith.constant 0 : i32
    %c0_i32_1 = arith.constant 0 : i32
    return %c0_i32, %c0_i32_0 : i32, i32
  }
  func.func @transform_3(%arg0: i32) -> (i32, i32) {
    %c0_i32 = arith.constant 0 : i32
    %c0_i32_0 = arith.constant 0 : i32
    %c0_i32_1 = arith.constant 0 : i32
    return %c0_i32, %c0_i32_0 : i32, i32
  }
  func.func @transform_4(%arg0: i32) -> (i32, i32) {
    %c0_i32 = arith.constant 0 : i32
    %c0_i32_0 = arith.constant 0 : i32
    %c0_i32_1 = arith.constant 0 : i32
    return %c0_i32, %c0_i32_0 : i32, i32
  }
  func.func @transform_5(%arg0: i32) -> (i32, i32) {
    %c0_i32 = arith.constant 0 : i32
    %c0_i32_0 = arith.constant 0 : i32
    %c0_i32_1 = arith.constant 0 : i32
    return %c0_i32, %c0_i32_0 : i32, i32
  }
  func.func @transform_6(%arg0: i32) -> (i32, i32) {
    %c0_i32 = arith.constant 0 : i32
    %c0_i32_0 = arith.constant 0 : i32
    %c0_i32_1 = arith.constant 0 : i32
    return %c0_i32, %c0_i32_0 : i32, i32
  }
  func.func @transform_7(%arg0: i32) -> (i32, i32) {
    %c0_i32 = arith.constant 0 : i32
    %c0_i32_0 = arith.constant 0 : i32
    %c0_i32_1 = arith.constant 0 : i32
    return %c0_i32, %c0_i32_0 : i32, i32
  }
  func.func @transform_8(%arg0: i32) -> (i32, i32) {
    %c0_i32 = arith.constant 0 : i32
    %c0_i32_0 = arith.constant 0 : i32
    %c0_i32_1 = arith.constant 0 : i32
    return %c0_i32, %c0_i32_0 : i32, i32
  }
  func.func @transform_9(%arg0: i32) -> (i32, i32, i32) {
    %c0_i32 = arith.constant 0 : i32
    %c0_i32_0 = arith.constant 0 : i32
    %c0_i32_1 = arith.constant 0 : i32
    return %arg0, %c0_i32, %c0_i32_0 : i32, i32, i32
  }
}

</mosaic_0001>

<llo_original>
// kernel: tpu_custom_call.1
$region0: #{tpu_custom_call.1}
  #allocation0 [shape = 'u32[]', space=smem, size = 0x4, offset = 0x4, fixed_abs, tag = 'smem constant byte address 0x4 - core index']
  #allocation1 [shape = 'u32[144,128]{1,0:T(1,128)}', space=vmem, size = 0x12000, scoped, tag = 'internal scratch']
  #allocation2 [shape = 'f32[8,332]{1,0:T(8,128)}', space=vmem, size = 0x3000, scoped, tag = 'scratch operand']
  #allocation3 [shape = 'f32[8,256]{1,0:T(8,128)}', space=vmem, size = 0x2000, scoped, tag = 'scratch operand']
  %s0 = inlined_call_operand.vmem [shape: f32[2,4,256], index: 0, kind: input, shape index: {}]
  %s1 = inlined_call_operand.vmem [shape: f32[8,4], index: 1, kind: input, shape index: {}]
  %s2 = inlined_call_operand.vmem [shape: f32[8,1], index: 2, kind: input, shape index: {}]
  %s3 = inlined_call_operand.vmem [shape: f32[8,1], index: 3, kind: input, shape index: {}]
  %s4 = inlined_call_operand.vmem [shape: f32[8,9], index: 4, kind: input, shape index: {}]
  %s5 = inlined_call_operand.vmem [shape: f32[8,1], index: 5, kind: input, shape index: {}]
  %s6 = inlined_call_operand.vmem [shape: f32[8,1], index: 6, kind: input, shape index: {}]
  %s7 = inlined_call_operand.vmem [shape: f32[4,8], index: 7, kind: input, shape index: {}]
  %s8 = inlined_call_operand.vmem [shape: f32[4,1], index: 8, kind: input, shape index: {}]
  %s9 = inlined_call_operand.hbm [shape: f32[2,4,256], index: 9, kind: output, shape index: {}]
  %s10 = sld [smem:[#allocation0]]
  $region69: #{tpu_custom_call.1} parent=0
    _
  %s12 = ssub.s32 1, %s10
  %s13 = scalar_select 0, %s12, %s10
  $region1: #{tpu_custom_call.1} parent=0
    #allocation4 [shape = 'u8[8192]{0}', space=vmem, size = 0x2000, scoped, tag = 'output window, operand 0']
    #allocation5 [shape = 's32[2]{0}', space=sflag, size = 0x8, scoped, tag = 'scoped memory for tpu_custom_call.1']
    %14 = vsyncpa [#allocation5], 0
    %s15 = scalar_lea.sflag [#allocation5], 1
    %16 = vsyncpa %s15, 0
    loop: start=0, step=1, limit=4
    $region2: #{tpu_custom_call.1} parent=1 // loop_pre_header
      _
    $region3: #{tpu_custom_call.1} parent=1 // loop_header
      %s18 = sphi 0, %s22
      %p19 = scmp.ge.s32.totalorder %s18, 4
      %s28 = sphi 0, %s30
      %s31 = sphi 0, %s28
      %s32 = sphi 0, %s31
      %s48 = sphi 0, %s32
      %s52 = sphi 0, %s52
      %s54 = sphi 0, %s52
      %s55 = sphi 0, %s54
      %s69 = sphi 0, %s55
      %s73 = sphi 0, %s73
      %s75 = sphi 0, %s73
      %s76 = sphi 0, %s75
      %s90 = sphi 0, %s76
      %s94 = sphi 0, %s94
      %s96 = sphi 0, %s94
      %s97 = sphi 0, %s96
      %s111 = sphi 0, %s97
      %s115 = sphi 0, %s115
      %s117 = sphi 0, %s115
      %s118 = sphi 0, %s117
      %s132 = sphi 0, %s118
      %s136 = sphi 0, %s136
      %s138 = sphi 0, %s136
      %s139 = sphi 0, %s138
      %s153 = sphi 0, %s139
      %s157 = sphi 0, %s157
      %s159 = sphi 0, %s157
      %s160 = sphi 0, %s159
      %s174 = sphi 0, %s160
      %s178 = sphi 0, %s178
      %s180 = sphi 0, %s178
      %s181 = sphi 0, %s180
      %s195 = sphi 0, %s181
      %s199 = sphi 0, %s199
      %s201 = sphi 0, %s199
      %s202 = sphi 0, %s201
      %s216 = sphi 0, %s202
      %s222 = sphi 0, %s224
      %s225 = sphi 0, %s222
      %s226 = sphi 0, %s225
      %s242 = sphi 0, %s226
    $region4: #{tpu_custom_call.1} parent=1 // loop_header_branch
      %21 = sbr.rel (%p19) target = $region8
    $region5: #{tpu_custom_call.1} parent=1 // loop_body
      %s23 = ssub.s32 %s18, 1
      %s24 = ssub.s32 %s18, 2
      %s25 = sadd.s32 %s18, 1
      %s26 = ssub.s32 %s18, %s25
      %p27 = scmp.eq.s32.totalorder %s26, 0
      %s29 = sadd.s32 %s28, 1
      %s30 = scalar_select %p27, %s28, %s29
      %p33 = pneg %p27
      %p34 = scmp.eq.s32.totalorder %s18, 1
      %p35 = por %p33, %p34
      %p36 = scmp.ne.s32.totalorder %s28, %s31
      %p37 = scmp.eq.s32.totalorder %s18, 0
      %p38 = por %p36, %p37
      %p39 = scmp.ne.s32.totalorder %s28, %s31
      %p40 = scmp.eq.s32.totalorder %s23, 1
      %p41 = por %p39, %p40
      %p42 = scmp.ne.s32.totalorder %s31, %s32
      %p43 = scmp.eq.s32.totalorder %s23, 0
      %p44 = por %p42, %p43
      %p45 = scmp.ne.s32.totalorder %s31, %s32
      %p46 = scmp.eq.s32.totalorder %s24, 1
      %p47 = por %p45, %p46
      %p49 = scmp.ne.s32.totalorder %s32, %s48
      %p50 = scmp.eq.s32.totalorder %s24, 0
      %p51 = por %p49, %p50
      %s53 = sadd.s32 %s52, 1
      %p56 = scmp.eq.s32.totalorder %s18, 1
      %p57 = scmp.ne.s32.totalorder %s52, %s54
      %p58 = scmp.eq.s32.totalorder %s18, 0
      %p59 = por %p57, %p58
      %p60 = scmp.ne.s32.totalorder %s52, %s54
      %p61 = scmp.eq.s32.totalorder %s23, 1
      %p62 = por %p60, %p61
      %p63 = scmp.ne.s32.totalorder %s54, %s55
      %p64 = scmp.eq.s32.totalorder %s23, 0
      %p65 = por %p63, %p64
      %p66 = scmp.ne.s32.totalorder %s54, %s55
      %p67 = scmp.eq.s32.totalorder %s24, 1
      %p68 = por %p66, %p67
      %p70 = scmp.ne.s32.totalorder %s55, %s69
      %p71 = scmp.eq.s32.totalorder %s24, 0
      %p72 = por %p70, %p71
      %s74 = sadd.s32 %s73, 1
      %p77 = scmp.eq.s32.totalorder %s18, 1
      %p78 = scmp.ne.s32.totalorder %s73, %s75
      %p79 = scmp.eq.s32.totalorder %s18, 0
      %p80 = por %p78, %p79
      %p81 = scmp.ne.s32.totalorder %s73, %s75
      %p82 = scmp.eq.s32.totalorder %s23, 1
      %p83 = por %p81, %p82
      %p84 = scmp.ne.s32.totalorder %s75, %s76
      %p85 = scmp.eq.s32.totalorder %s23, 0
      %p86 = por %p84, %p85
      %p87 = scmp.ne.s32.totalorder %s75, %s76
      %p88 = scmp.eq.s32.totalorder %s24, 1
      %p89 = por %p87, %p88
      %p91 = scmp.ne.s32.totalorder %s76, %s90
      %p92 = scmp.eq.s32.totalorder %s24, 0
      %p93 = por %p91, %p92
      %s95 = sadd.s32 %s94, 1
      %p98 = scmp.eq.s32.totalorder %s18, 1
      %p99 = scmp.ne.s32.totalorder %s94, %s96
      %p100 = scmp.eq.s32.totalorder %s18, 0
      %p101 = por %p99, %p100
      %p102 = scmp.ne.s32.totalorder %s94, %s96
      %p103 = scmp.eq.s32.totalorder %s23, 1
      %p104 = por %p102, %p103
      %p105 = scmp.ne.s32.totalorder %s96, %s97
      %p106 = scmp.eq.s32.totalorder %s23, 0
      %p107 = por %p105, %p106
      %p108 = scmp.ne.s32.totalorder %s96, %s97
      %p109 = scmp.eq.s32.totalorder %s24, 1
      %p110 = por %p108, %p109
      %p112 = scmp.ne.s32.totalorder %s97, %s111
      %p113 = scmp.eq.s32.totalorder %s24, 0
      %p114 = por %p112, %p113
      %s116 = sadd.s32 %s115, 1
      %p119 = scmp.eq.s32.totalorder %s18, 1
      %p120 = scmp.ne.s32.totalorder %s115, %s117
      %p121 = scmp.eq.s32.totalorder %s18, 0
      %p122 = por %p120, %p121
      %p123 = scmp.ne.s32.totalorder %s115, %s117
      %p124 = scmp.eq.s32.totalorder %s23, 1
      %p125 = por %p123, %p124
      %p126 = scmp.ne.s32.totalorder %s117, %s118
      %p127 = scmp.eq.s32.totalorder %s23, 0
      %p128 = por %p126, %p127
      %p129 = scmp.ne.s32.totalorder %s117, %s118
      %p130 = scmp.eq.s32.totalorder %s24, 1
      %p131 = por %p129, %p130
      %p133 = scmp.ne.s32.totalorder %s118, %s132
      %p134 = scmp.eq.s32.totalorder %s24, 0
      %p135 = por %p133, %p134
      %s137 = sadd.s32 %s136, 1
      %p140 = scmp.eq.s32.totalorder %s18, 1
      %p141 = scmp.ne.s32.totalorder %s136, %s138
      %p142 = scmp.eq.s32.totalorder %s18, 0
      %p143 = por %p141, %p142
      %p144 = scmp.ne.s32.totalorder %s136, %s138
      %p145 = scmp.eq.s32.totalorder %s23, 1
      %p146 = por %p144, %p145
      %p147 = scmp.ne.s32.totalorder %s138, %s139
      %p148 = scmp.eq.s32.totalorder %s23, 0
      %p149 = por %p147, %p148
      %p150 = scmp.ne.s32.totalorder %s138, %s139
      %p151 = scmp.eq.s32.totalorder %s24, 1
      %p152 = por %p150, %p151
      %p154 = scmp.ne.s32.totalorder %s139, %s153
      %p155 = scmp.eq.s32.totalorder %s24, 0
      %p156 = por %p154, %p155
      %s158 = sadd.s32 %s157, 1
      %p161 = scmp.eq.s32.totalorder %s18, 1
      %p162 = scmp.ne.s32.totalorder %s157, %s159
      %p163 = scmp.eq.s32.totalorder %s18, 0
      %p164 = por %p162, %p163
      %p165 = scmp.ne.s32.totalorder %s157, %s159
      %p166 = scmp.eq.s32.totalorder %s23, 1
      %p167 = por %p165, %p166
      %p168 = scmp.ne.s32.totalorder %s159, %s160
      %p169 = scmp.eq.s32.totalorder %s23, 0
      %p170 = por %p168, %p169
      %p171 = scmp.ne.s32.totalorder %s159, %s160
      %p172 = scmp.eq.s32.totalorder %s24, 1
      %p173 = por %p171, %p172
      %p175 = scmp.ne.s32.totalorder %s160, %s174
      %p176 = scmp.eq.s32.totalorder %s24, 0
      %p177 = por %p175, %p176
      %s179 = sadd.s32 %s178, 1
      %p182 = scmp.eq.s32.totalorder %s18, 1
      %p183 = scmp.ne.s32.totalorder %s178, %s180
      %p184 = scmp.eq.s32.totalorder %s18, 0
      %p185 = por %p183, %p184
      %p186 = scmp.ne.s32.totalorder %s178, %s180
      %p187 = scmp.eq.s32.totalorder %s23, 1
      %p188 = por %p186, %p187
      %p189 = scmp.ne.s32.totalorder %s180, %s181
      %p190 = scmp.eq.s32.totalorder %s23, 0
      %p191 = por %p189, %p190
      %p192 = scmp.ne.s32.totalorder %s180, %s181
      %p193 = scmp.eq.s32.totalorder %s24, 1
      %p194 = por %p192, %p193
      %p196 = scmp.ne.s32.totalorder %s181, %s195
      %p197 = scmp.eq.s32.totalorder %s24, 0
      %p198 = por %p196, %p197
      %s200 = sadd.s32 %s199, 1
      %p203 = scmp.eq.s32.totalorder %s18, 1
      %p204 = scmp.ne.s32.totalorder %s199, %s201
      %p205 = scmp.eq.s32.totalorder %s18, 0
      %p206 = por %p204, %p205
      %p207 = scmp.ne.s32.totalorder %s199, %s201
      %p208 = scmp.eq.s32.totalorder %s23, 1
      %p209 = por %p207, %p208
      %p210 = scmp.ne.s32.totalorder %s201, %s202
      %p211 = scmp.eq.s32.totalorder %s23, 0
      %p212 = por %p210, %p211
      %p213 = scmp.ne.s32.totalorder %s201, %s202
      %p214 = scmp.eq.s32.totalorder %s24, 1
      %p215 = por %p213, %p214
      %p217 = scmp.ne.s32.totalorder %s202, %s216
      %p218 = scmp.eq.s32.totalorder %s24, 0
      %p219 = por %p217, %p218
      %s220 = ssub.s32 %s18, %s25
      %p221 = scmp.eq.s32.totalorder %s220, 0
      %s223 = sadd.s32 %s222, 1
      %s224 = scalar_select %p221, %s222, %s223
      %p227 = pneg %p221
      %p228 = scmp.eq.s32.totalorder %s18, 1
      %p229 = por %p227, %p228
      %p230 = scmp.ne.s32.totalorder %s222, %s225
      %p231 = scmp.eq.s32.totalorder %s18, 0
      %p232 = por %p230, %p231
      %p233 = scmp.ne.s32.totalorder %s222, %s225
      %p234 = scmp.eq.s32.totalorder %s23, 1
      %p235 = por %p233, %p234
      %p236 = scmp.ne.s32.totalorder %s225, %s226
      %p237 = scmp.eq.s32.totalorder %s23, 0
      %p238 = por %p236, %p237
      %p239 = scmp.ne.s32.totalorder %s225, %s226
      %p240 = scmp.eq.s32.totalorder %s24, 1
      %p241 = por %p239, %p240
      %p243 = scmp.ne.s32.totalorder %s226, %s242
      %p244 = scmp.eq.s32.totalorder %s24, 0
      %p245 = por %p243, %p244
      %p246 = scmp.le.s32.totalorder 1, %s18
      %p247 = scmp.lt.s32.totalorder %s18, 3
      %p248 = pnand %p246, %p247
      %p249 = pneg %p248
      // Predicated region
      $region9: #{tpu_custom_call.1} parent=5 // pred_check
        _
      $region10: #{tpu_custom_call.1} parent=5 // pred_check_branch
        %251 = sbr.rel (%p248) target = $region12
      $region11: #{tpu_custom_call.1} parent=5 // pred_region
        %s252 = ssub.s32 %s18, 1
        // Predicated region
        $region13: #{tpu_custom_call.1} parent=11 // pred_check
          %p253 = pneg %p65
        $region14: #{tpu_custom_call.1} parent=11 // pred_check_branch
          %255 = sbr.rel (%p253) target = $region16
        $region15: #{tpu_custom_call.1} parent=11 // pred_region
          _
        $region16: #{tpu_custom_call.1} parent=11 // pred_fallthru
          _
        // Predicated region
        $region17: #{tpu_custom_call.1} parent=11 // pred_check
          %p256 = pneg %p86
        $region18: #{tpu_custom_call.1} parent=11 // pred_check_branch
          %258 = sbr.rel (%p256) target = $region20
        $region19: #{tpu_custom_call.1} parent=11 // pred_region
          _
        $region20: #{tpu_custom_call.1} parent=11 // pred_fallthru
          _
        // Predicated region
        $region21: #{tpu_custom_call.1} parent=11 // pred_check
          %p259 = pneg %p107
        $region22: #{tpu_custom_call.1} parent=11 // pred_check_branch
          %261 = sbr.rel (%p259) target = $region24
        $region23: #{tpu_custom_call.1} parent=11 // pred_region
          _
        $region24: #{tpu_custom_call.1} parent=11 // pred_fallthru
          _
        // Predicated region
        $region25: #{tpu_custom_call.1} parent=11 // pred_check
          %p262 = pneg %p128
        $region26: #{tpu_custom_call.1} parent=11 // pred_check_branch
          %264 = sbr.rel (%p262) target = $region28
        $region27: #{tpu_custom_call.1} parent=11 // pred_region
          _
        $region28: #{tpu_custom_call.1} parent=11 // pred_fallthru
          _
        // Predicated region
        $region29: #{tpu_custom_call.1} parent=11 // pred_check
          %p265 = pneg %p149
        $region30: #{tpu_custom_call.1} parent=11 // pred_check_branch
          %267 = sbr.rel (%p265) target = $region32
        $region31: #{tpu_custom_call.1} parent=11 // pred_region
          _
        $region32: #{tpu_custom_call.1} parent=11 // pred_fallthru
          _
        // Predicated region
        $region33: #{tpu_custom_call.1} parent=11 // pred_check
          %p268 = pneg %p170
        $region34: #{tpu_custom_call.1} parent=11 // pred_check_branch
          %270 = sbr.rel (%p268) target = $region36
        $region35: #{tpu_custom_call.1} parent=11 // pred_region
          _
        $region36: #{tpu_custom_call.1} parent=11 // pred_fallthru
          _
        // Predicated region
        $region37: #{tpu_custom_call.1} parent=11 // pred_check
          %p271 = pneg %p191
        $region38: #{tpu_custom_call.1} parent=11 // pred_check_branch
          %273 = sbr.rel (%p271) target = $region40
        $region39: #{tpu_custom_call.1} parent=11 // pred_region
          _
        $region40: #{tpu_custom_call.1} parent=11 // pred_fallthru
          _
        // Predicated region
        $region41: #{tpu_custom_call.1} parent=11 // pred_check
          %p274 = pneg %p212
        $region42: #{tpu_custom_call.1} parent=11 // pred_check_branch
          %276 = sbr.rel (%p274) target = $region44
        $region43: #{tpu_custom_call.1} parent=11 // pred_region
          _
        $region44: #{tpu_custom_call.1} parent=11 // pred_fallthru
          _
      $region12: #{tpu_custom_call.1} parent=5 // pred_fallthru
        _
      %p277 = scmp.lt.s32.totalorder %s18, 2
      // Predicated region
      $region45: #{tpu_custom_call.1} parent=5 // pred_check
        %p278 = pneg %p277
      $region46: #{tpu_custom_call.1} parent=5 // pred_check_branch
        %280 = sbr.rel (%p278) target = $region48
      $region47: #{tpu_custom_call.1} parent=5 // pred_region
        // Predicated region
        $region49: #{tpu_custom_call.1} parent=47 // pred_check
          %p281 = pneg %p38
        $region50: #{tpu_custom_call.1} parent=47 // pred_check_branch
          %283 = sbr.rel (%p281) target = $region52
        $region51: #{tpu_custom_call.1} parent=47 // pred_region
          %p284 = scmp.lt.s32.totalorder %s18, 1
          %s285 = scalar_select %p284, %s18, 1
          %s286 = smul.addr %s285, 2
          %s287 = smul.addr %s286, 4
          %s288 = scalar_lea.vmem %s0, %s287
        $region52: #{tpu_custom_call.1} parent=47 // pred_fallthru
          _
      $region48: #{tpu_custom_call.1} parent=5 // pred_fallthru
        _
      %p289 = scmp.le.s32.totalorder 1, %s18
      %p290 = scmp.lt.s32.totalorder %s18, 3
      %p291 = pnand %p289, %p290
      %p292 = pneg %p291
      // Predicated region
      $region53: #{tpu_custom_call.1} parent=5 // pred_check
        _
      $region54: #{tpu_custom_call.1} parent=5 // pred_check_branch
        %294 = sbr.rel (%p291) target = $region56
      $region55: #{tpu_custom_call.1} parent=5 // pred_region
        %s295 = ssub.s32 %s18, 1
        %p296 = scmp.lt.s32.totalorder %s23, 1
        %s297 = scalar_select %p296, %s23, 1
        %s298 = smul.addr %s297, 2
        %s299 = smul.addr %s298, 4
        %s300 = scalar_lea.vmem %s0, %s299
        %p301 = pneg %p44
        %p302 = pneg %p41
        %p303 = pneg %p65
        %p304 = pneg %p62
        %p305 = pneg %p86
        %p306 = pneg %p83
        %p307 = pneg %p107
        %p308 = pneg %p104
        %p309 = pneg %p128
        %p310 = pneg %p125
        %p311 = pneg %p149
        %p312 = pneg %p146
        %p313 = pneg %p170
        %p314 = pneg %p167
        %p315 = pneg %p191
        %p316 = pneg %p188
        %p317 = pneg %p212
        %p318 = pneg %p209
        %p319 = pneg %p238
        %p320 = pneg %p235
        %s321 = sand.u32 %s225, 1
        %s322 = scalar_lea.sflag [#allocation5], %s321
        %s323 = sand.u32 %s225, 1
        %s324 = smul.addr %s323, 8
        %s325 = scalar_lea.vmem [#allocation4], %s324
        %p326 = scmp.lt.s32.totalorder %s23, 1
        %s327 = scalar_select %p326, %s23, 1
        %s328 = smul.addr %s327, 2
        %s329 = smul.addr %s328, 4
        %s330 = scalar_lea.vmem %s0, %s329
        %v331 = vld [vmem:[%s330] sm:$0xff]
        %v332 = vld [vmem:[%s1] sm:$0xff]
        %v333 = vld [vmem:[%s2] sm:$0xff]
        %335 = vset.pattern.permute.xlu0 0
        %336 = vperm.xlu0 %335, %v333
        %v337 = vpop.permute.xlu0 %336
        %v340 = vcombine.high %v331, %v331
        %vm341 = vcmask 31744
        %v343 = vsel %vm341, %v332, 0
        %vm345 = vcmask 1043456
        %v346 = vsel %vm345, %v331, 0
        %v348 = vsel %vm345, %v340, 0
        %350 = vmatprep.subr.mxu0 %v348
        %351 = vmatpush1.msra.mxu0 %v346
        %352 = vmatprep.subr.mxu0 0.0
        %353 = vmatpush1.msra.mxu0 0.0
        %354 = vmatprep.subr.mxu0 0.0
        %355 = vmatpush1.msra.mxu0 0.0
        %356 = vmatprep.subr.mxu0 0.0
        %357 = vmatpush1.msra.mxu0 0.0
        %358 = vmatprep.subr.mxu0 0.0
        %359 = vmatpush1.msra.mxu0 0.0
        %360 = vmatprep.subr.mxu0 0.0
        %361 = vmatpush1.msra.mxu0 0.0
        %362 = vmatprep.subr.mxu0 0.0
        %363 = vmatpush1.msra.mxu0 0.0
        %364 = vmatprep.subr.mxu0 0.0
        %365 = vmatpush1.msra.mxu0 0.0
        %366 = vmatprep.subr.mxu0 0.0
        %367 = vmatpush1.msra.mxu0 0.0
        %368 = vmatprep.subr.mxu0 0.0
        %369 = vmatpush1.msra.mxu0 0.0
        %370 = vmatprep.subr.mxu0 0.0
        %371 = vmatpush1.msra.mxu0 0.0
        %372 = vmatprep.subr.mxu0 0.0
        %373 = vmatpush1.msra.mxu0 0.0
        %374 = vmatprep.subr.mxu0 0.0
        %375 = vmatpush1.msra.mxu0 0.0
        %376 = vmatprep.subr.mxu0 0.0
        %377 = vmatpush1.msra.mxu0 0.0
        %378 = vmatprep.subr.mxu0 0.0
        %379 = vmatpush1.msra.mxu0 0.0
        %380 = vmatprep.subr.mxu0 0.0
        %381 = vmatpush1.msra.mxu0 0.0
        %382 = vmatprep.subr.mxu0 0.0
        %383 = vmatpush1.msra.mxu0 0.0
        %384 = vmatprep.subr.mxu0 0.0
        %385 = vmatpush1.msra.mxu0 0.0
        %386 = vmatprep.subr.mxu0 0.0
        %387 = vmatpush1.msra.mxu0 0.0
        %388 = vmatprep.subr.mxu0 0.0
        %389 = vmatpush1.msra.mxu0 0.0
        %390 = vmatprep.subr.mxu0 0.0
        %391 = vmatpush1.msra.mxu0 0.0
        %392 = vmatprep.subr.mxu0 0.0
        %393 = vmatpush1.msra.mxu0 0.0
        %394 = vmatprep.subr.mxu0 0.0
        %395 = vmatpush1.msra.mxu0 0.0
        %396 = vmatprep.subr.mxu0 0.0
        %397 = vmatpush1.msra.mxu0 0.0
        %398 = vmatprep.subr.mxu0 0.0
        %399 = vmatpush1.msra.mxu0 0.0
        %400 = vmatprep.subr.mxu0 0.0
        %401 = vmatpush1.msra.mxu0 0.0
        %402 = vmatprep.subr.mxu0 0.0
        %403 = vmatpush1.msra.mxu0 0.0
        %404 = vmatprep.subr.mxu0 0.0
        %405 = vmatpush1.msra.mxu0 0.0
        %406 = vmatprep.subr.mxu0 0.0
        %407 = vmatpush1.msra.mxu0 0.0
        %408 = vmatprep.subr.mxu0 0.0
        %409 = vmatpush1.msra.mxu0 0.0
        %410 = vmatprep.subr.mxu0 0.0
        %411 = vmatpush1.msra.mxu0 0.0
        %412 = vmatprep.subr.mxu0 0.0
        %413 = vmatpush1.msra.mxu0 0.0
        %414 = vmatprep.mubr.f32.mxu0 0.0
        %415 = vmatmul.mubr.f32.gmra.mrb[0].mxu0 %v343
        %v416 = vpop.f32.mrb[0].mxu0
        %v417 = vadd.f32 %v337, %v416
        %v418 = vpop.f32.mrb[0].mxu0
        %v419 = vadd.f32 %v337, %v418
        %420 = vdwg.mxu0
        %vm421 = vcmp.gt.f32.partialorder %v417, 0.0
        %vm422 = vcmp.gt.f32.partialorder %v419, 0.0
        %v423 = vld [vmem:[%s3] sm:$0xff]
        %425 = vset.pattern.permute.xlu0 0
        %426 = vperm.xlu0 %425, %v423
        %v427 = vpop.permute.xlu0 %426
        %v429 = vmul.f32 %v417, %v427
        %v430 = vmul.f32 %v419, %v427
        %v431 = vsel %vm421, %v417, %v429
        %v432 = vsel %vm422, %v419, %v430
        %433 = vst [vmem:[#allocation2] sm:$0xff] 0.0
        %434 = vst [vmem:[#allocation2 + $0x8] sm:$0xff] 0.0
        %vm435 = vcmask 621568
        %436 = vst.msk [vmem:[#allocation2 + $0x10] sm:$0xff] %vm435, 0.0
        %438 = vrot.lane.b32.xlu0 %v431, 19
        %v439 = vpop.permute.xlu0 %438
        %vm441 = vcmask 285848
        %442 = vst.msk [vmem:[#allocation2] sm:$0xff] %vm441, %v439
        %443 = vrot.lane.b32.xlu0 %v431, 21
        %v444 = vpop.permute.xlu0 %443
        %vm446 = vcmask 433448
        %447 = vst.msk [vmem:[#allocation2] sm:$0xff] %vm446, %v444
        %448 = vrot.lane.b32.xlu0 %v431, 23
        %v449 = vpop.permute.xlu0 %448
        %vm451 = vcmask 581048
        %452 = vst.msk [vmem:[#allocation2] sm:$0xff] %vm451, %v449
        %453 = vrot.lane.b32.xlu0 %v431, 25
        %v454 = vpop.permute.xlu0 %453
        %vm456 = vcmask 728648
        %457 = vst.msk [vmem:[#allocation2] sm:$0xff] %vm456, %v454
        %458 = vrot.lane.b32.xlu0 %v431, 27
        %v459 = vpop.permute.xlu0 %458
        %vm461 = vcmask 876248
        %462 = vst.msk [vmem:[#allocation2] sm:$0xff] %vm461, %v459
        %463 = vrot.lane.b32.xlu0 %v431, 29
        %v464 = vpop.permute.xlu0 %463
        %vm466 = vcmask 1023848
        %467 = vst.msk [vmem:[#allocation2] sm:$0xff] %vm466, %v464
        %468 = vrot.lane.b32.xlu0 %v431, 31
        %v469 = vpop.permute.xlu0 %468
        %vm471 = vcmask 1048568
        %472 = vst.msk [vmem:[#allocation2] sm:$0xff] %vm471, %v469
        %vm473 = vcmask 121856
        %474 = vst.msk [vmem:[#allocation2 + $0x8] sm:$0xff] %vm473, %v469
        %475 = vrot.lane.b32.xlu0 %v431, 33
        %v476 = vpop.permute.xlu0 %475
        %vm478 = vcmask 269448
        %479 = vst.msk [vmem:[#allocation2 + $0x8] sm:$0xff] %vm478, %v476
        %481 = vrot.lane.b32.xlu0 %v432, 35
        %v482 = vpop.permute.xlu0 %481
        %vm484 = vcmask 417048
        %485 = vst.msk [vmem:[#allocation2 + $0x8] sm:$0xff] %vm484, %v482
        %486 = vrot.lane.b32.xlu0 %v432, 37
        %v487 = vpop.permute.xlu0 %486
        %vm489 = vcmask 564648
        %490 = vst.msk [vmem:[#allocation2 + $0x8] sm:$0xff] %vm489, %v487
        %491 = vrot.lane.b32.xlu0 %v432, 39
        %v492 = vpop.permute.xlu0 %491
        %vm494 = vcmask 712248
        %495 = vst.msk [vmem:[#allocation2 + $0x8] sm:$0xff] %vm494, %v492
        %496 = vrot.lane.b32.xlu0 %v432, 41
        %v497 = vpop.permute.xlu0 %496
        %vm499 = vcmask 859848
        %500 = vst.msk [vmem:[#allocation2 + $0x8] sm:$0xff] %vm499, %v497
        %501 = vrot.lane.b32.xlu0 %v432, 43
        %v502 = vpop.permute.xlu0 %501
        %vm504 = vcmask 1007448
        %505 = vst.msk [vmem:[#allocation2 + $0x8] sm:$0xff] %vm504, %v502
        %506 = vrot.lane.b32.xlu0 %v432, 45
        %v507 = vpop.permute.xlu0 %506
        %vm509 = vcmask 1048552
        %510 = vst.msk [vmem:[#allocation2 + $0x8] sm:$0xff] %vm509, %v507
        %vm511 = vcmask 105472
        %512 = vst.msk [vmem:[#allocation2 + $0x10] sm:$0xff] %vm511, %v507
        %513 = vrot.lane.b32.xlu0 %v432, 47
        %v514 = vpop.permute.xlu0 %513
        %vm516 = vcmask 253048
        %517 = vst.msk [vmem:[#allocation2 + $0x10] sm:$0xff] %vm516, %v514
        %518 = vrot.lane.b32.xlu0 %v432, 49
        %v519 = vpop.permute.xlu0 %518
        %vm521 = vcmask 400648
        %522 = vst.msk [vmem:[#allocation2 + $0x10] sm:$0xff] %vm521, %v519
        %v523 = vld [vmem:[%s4] sm:$0xff]
        %v524 = vld [vmem:[#allocation2] sm:$0xff]
        %v525 = vld [vmem:[#allocation2 + $0x8] sm:$0xff]
        %v526 = vld [vmem:[#allocation2 + $0x10] sm:$0xff]
        %528 = vset.pattern.permute.xlu0 0
        %529 = vperm.xlu0 %528, %v523
        %v530 = vpop.permute.xlu0 %529
        %v532 = vmul.f32 %v530, %v524
        %v533 = vmul.f32 %v530, %v525
        %v534 = vmul.f32 %v530, %v526
        %535 = vset.pattern.permute.xlu0 1
        %536 = vperm.xlu0 %535, %v523
        %v537 = vpop.permute.xlu0 %536
        %v539 = vmul.f32 %v537, %v524
        %v540 = vmul.f32 %v537, %v525
        %v541 = vmul.f32 %v537, %v526
        %545 = vrot.lane.b32.xlu0 %v539, 127
        %v546 = vpop.permute.xlu0 %545
        %547 = vrot.lane.b32.xlu0 %v540, 127
        %v548 = vpop.permute.xlu0 %547
        %549 = vrot.lane.b32.xlu0 %v541, 127
        %v550 = vpop.permute.xlu0 %549
        %vm551 = vcmask 1039360
        %v552 = vsel %vm551, %v546, %v548
        %v553 = vsel %vm551, %v548, %v550
        %v557 = vadd.f32 %v532, %v552
        %v558 = vadd.f32 %v533, %v553
        %v559 = vadd.f32 %v534, %v550
        %560 = vset.pattern.permute.xlu0 2
        %561 = vperm.xlu0 %560, %v523
        %v562 = vpop.permute.xlu0 %561
        %v564 = vmul.f32 %v562, %v524
        %v565 = vmul.f32 %v562, %v525
        %v566 = vmul.f32 %v562, %v526
        %570 = vrot.lane.b32.xlu0 %v564, 126
        %v571 = vpop.permute.xlu0 %570
        %572 = vrot.lane.b32.xlu0 %v565, 126
        %v573 = vpop.permute.xlu0 %572
        %574 = vrot.lane.b32.xlu0 %v566, 126
        %v575 = vpop.permute.xlu0 %574
        %vm576 = vcmask 1031168
        %v577 = vsel %vm576, %v571, %v573
        %v578 = vsel %vm576, %v573, %v575
        %v582 = vadd.f32 %v557, %v577
        %v583 = vadd.f32 %v558, %v578
        %v584 = vadd.f32 %v559, %v575
        %585 = vset.pattern.permute.xlu0 3
        %586 = vperm.xlu0 %585, %v523
        %v587 = vpop.permute.xlu0 %586
        %v589 = vmul.f32 %v587, %v524
        %v590 = vmul.f32 %v587, %v525
        %v591 = vmul.f32 %v587, %v526
        %595 = vrot.lane.b32.xlu0 %v589, 110
        %v596 = vpop.permute.xlu0 %595
        %597 = vrot.lane.b32.xlu0 %v590, 110
        %v598 = vpop.permute.xlu0 %597
        %599 = vrot.lane.b32.xlu0 %v591, 110
        %v600 = vpop.permute.xlu0 %599
        %vm601 = vcmask 900096
        %v602 = vsel %vm601, %v596, %v598
        %v603 = vsel %vm601, %v598, %v600
        %v607 = vadd.f32 %v582, %v602
        %v608 = vadd.f32 %v583, %v603
        %v609 = vadd.f32 %v584, %v600
        %610 = vset.pattern.permute.xlu0 4
        %611 = vperm.xlu0 %610, %v523
        %v612 = vpop.permute.xlu0 %611
        %v614 = vmul.f32 %v612, %v524
        %v615 = vmul.f32 %v612, %v525
        %v616 = vmul.f32 %v612, %v526
        %620 = vrot.lane.b32.xlu0 %v614, 109
        %v621 = vpop.permute.xlu0 %620
        %622 = vrot.lane.b32.xlu0 %v615, 109
        %v623 = vpop.permute.xlu0 %622
        %624 = vrot.lane.b32.xlu0 %v616, 109
        %v625 = vpop.permute.xlu0 %624
        %vm626 = vcmask 891904
        %v627 = vsel %vm626, %v621, %v623
        %v628 = vsel %vm626, %v623, %v625
        %v632 = vadd.f32 %v607, %v627
        %v633 = vadd.f32 %v608, %v628
        %v634 = vadd.f32 %v609, %v625
        %635 = vset.pattern.permute.xlu0 5
        %636 = vperm.xlu0 %635, %v523
        %v637 = vpop.permute.xlu0 %636
        %v639 = vmul.f32 %v637, %v524
        %v640 = vmul.f32 %v637, %v525
        %v641 = vmul.f32 %v637, %v526
        %645 = vrot.lane.b32.xlu0 %v639, 108
        %v646 = vpop.permute.xlu0 %645
        %647 = vrot.lane.b32.xlu0 %v640, 108
        %v648 = vpop.permute.xlu0 %647
        %649 = vrot.lane.b32.xlu0 %v641, 108
        %v650 = vpop.permute.xlu0 %649
        %vm651 = vcmask 883712
        %v652 = vsel %vm651, %v646, %v648
        %v653 = vsel %vm651, %v648, %v650
        %v657 = vadd.f32 %v632, %v652
        %v658 = vadd.f32 %v633, %v653
        %v659 = vadd.f32 %v634, %v650
        %660 = vset.pattern.permute.xlu0 6
        %661 = vperm.xlu0 %660, %v523
        %v662 = vpop.permute.xlu0 %661
        %v664 = vmul.f32 %v662, %v524
        %v665 = vmul.f32 %v662, %v525
        %v666 = vmul.f32 %v662, %v526
        %670 = vrot.lane.b32.xlu0 %v664, 92
        %v671 = vpop.permute.xlu0 %670
        %672 = vrot.lane.b32.xlu0 %v665, 92
        %v673 = vpop.permute.xlu0 %672
        %674 = vrot.lane.b32.xlu0 %v666, 92
        %v675 = vpop.permute.xlu0 %674
        %vm676 = vcmask 752640
        %v677 = vsel %vm676, %v671, %v673
        %v678 = vsel %vm676, %v673, %v675
        %v682 = vadd.f32 %v657, %v677
        %v683 = vadd.f32 %v658, %v678
        %v684 = vadd.f32 %v659, %v675
        %685 = vset.pattern.permute.xlu0 7
        %686 = vperm.xlu0 %685, %v523
        %v687 = vpop.permute.xlu0 %686
        %v689 = vmul.f32 %v687, %v524
        %v690 = vmul.f32 %v687, %v525
        %v691 = vmul.f32 %v687, %v526
        %695 = vrot.lane.b32.xlu0 %v689, 91
        %v696 = vpop.permute.xlu0 %695
        %697 = vrot.lane.b32.xlu0 %v690, 91
        %v698 = vpop.permute.xlu0 %697
        %699 = vrot.lane.b32.xlu0 %v691, 91
        %v700 = vpop.permute.xlu0 %699
        %vm701 = vcmask 744448
        %v702 = vsel %vm701, %v696, %v698
        %v703 = vsel %vm701, %v698, %v700
        %v707 = vadd.f32 %v682, %v702
        %v708 = vadd.f32 %v683, %v703
        %v709 = vadd.f32 %v684, %v700
        %710 = vset.pattern.permute.xlu0 8
        %711 = vperm.xlu0 %710, %v523
        %v712 = vpop.permute.xlu0 %711
        %v714 = vmul.f32 %v712, %v524
        %v715 = vmul.f32 %v712, %v525
        %v716 = vmul.f32 %v712, %v526
        %720 = vrot.lane.b32.xlu0 %v714, 90
        %v721 = vpop.permute.xlu0 %720
        %722 = vrot.lane.b32.xlu0 %v715, 90
        %v723 = vpop.permute.xlu0 %722
        %724 = vrot.lane.b32.xlu0 %v716, 90
        %v725 = vpop.permute.xlu0 %724
        %vm726 = vcmask 736256
        %v727 = vsel %vm726, %v721, %v723
        %v728 = vsel %vm726, %v723, %v725
        %v732 = vadd.f32 %v707, %v727
        %v733 = vadd.f32 %v708, %v728
        %v734 = vadd.f32 %v709, %v725
        %v735 = vld [vmem:[%s5] sm:$0xff]
        %737 = vset.pattern.permute.xlu0 0
        %738 = vperm.xlu0 %737, %v735
        %v739 = vpop.permute.xlu0 %738
        %v741 = vadd.f32 %v732, %v739
        %v742 = vadd.f32 %v733, %v739
        %v743 = vadd.f32 %v734, %v739
        %vm744 = vcmp.gt.f32.partialorder %v741, 0.0
        %vm745 = vcmp.gt.f32.partialorder %v742, 0.0
        %vm746 = vcmp.gt.f32.partialorder %v743, 0.0
        %v747 = vld [vmem:[%s6] sm:$0xff]
        %749 = vset.pattern.permute.xlu0 0
        %750 = vperm.xlu0 %749, %v747
        %v751 = vpop.permute.xlu0 %750
        %v753 = vmul.f32 %v741, %v751
        %v754 = vmul.f32 %v742, %v751
        %v755 = vmul.f32 %v743, %v751
        %v756 = vsel %vm744, %v741, %v753
        %v757 = vsel %vm745, %v742, %v754
        %v758 = vsel %vm746, %v743, %v755
        %vm759 = vcmask 130048
        %760 = vst.msk [vmem:[#allocation3] sm:$0xff] %vm759, %v756
        %762 = vrot.lane.b32.xlu0 %v756, 126
        %v763 = vpop.permute.xlu0 %762
        %vm765 = vcmask 261248
        %766 = vst.msk [vmem:[#allocation3] sm:$0xff] %vm765, %v763
        %767 = vrot.lane.b32.xlu0 %v756, 124
        %v768 = vpop.permute.xlu0 %767
        %vm770 = vcmask 392448
        %771 = vst.msk [vmem:[#allocation3] sm:$0xff] %vm770, %v768
        %772 = vrot.lane.b32.xlu0 %v756, 122
        %v773 = vpop.permute.xlu0 %772
        %vm775 = vcmask 523648
        %776 = vst.msk [vmem:[#allocation3] sm:$0xff] %vm775, %v773
        %777 = vrot.lane.b32.xlu0 %v756, 120
        %v778 = vpop.permute.xlu0 %777
        %vm780 = vcmask 654848
        %781 = vst.msk [vmem:[#allocation3] sm:$0xff] %vm780, %v778
        %782 = vrot.lane.b32.xlu0 %v756, 118
        %v783 = vpop.permute.xlu0 %782
        %vm785 = vcmask 786048
        %786 = vst.msk [vmem:[#allocation3] sm:$0xff] %vm785, %v783
        %787 = vrot.lane.b32.xlu0 %v756, 116
        %v788 = vpop.permute.xlu0 %787
        %vm790 = vcmask 917248
        %791 = vst.msk [vmem:[#allocation3] sm:$0xff] %vm790, %v788
        %793 = vrot.lane.b32.xlu0 %v756, 114
        %v794 = vpop.permute.xlu0 %793
        %795 = vrot.lane.b32.xlu0 %v757, 114
        %v796 = vpop.permute.xlu0 %795
        %vm797 = vcmask 932864
        %v798 = vsel %vm797, %v794, %v796
        %vm800 = vcmask 1048448
        %801 = vst.msk [vmem:[#allocation3] sm:$0xff] %vm800, %v798
        %802 = vrot.lane.b32.xlu0 %v757, 112
        %v803 = vpop.permute.xlu0 %802
        %805 = vst.msk [vmem:[#allocation3 + $0x8] sm:$0xff] %vm759, %v803
        %806 = vrot.lane.b32.xlu0 %v757, 110
        %v807 = vpop.permute.xlu0 %806
        %809 = vst.msk [vmem:[#allocation3 + $0x8] sm:$0xff] %vm765, %v807
        %810 = vrot.lane.b32.xlu0 %v757, 108
        %v811 = vpop.permute.xlu0 %810
        %813 = vst.msk [vmem:[#allocation3 + $0x8] sm:$0xff] %vm770, %v811
        %814 = vrot.lane.b32.xlu0 %v757, 106
        %v815 = vpop.permute.xlu0 %814
        %817 = vst.msk [vmem:[#allocation3 + $0x8] sm:$0xff] %vm775, %v815
        %818 = vrot.lane.b32.xlu0 %v757, 104
        %v819 = vpop.permute.xlu0 %818
        %821 = vst.msk [vmem:[#allocation3 + $0x8] sm:$0xff] %vm780, %v819
        %822 = vrot.lane.b32.xlu0 %v757, 102
        %v823 = vpop.permute.xlu0 %822
        %825 = vst.msk [vmem:[#allocation3 + $0x8] sm:$0xff] %vm785, %v823
        %827 = vrot.lane.b32.xlu0 %v757, 100
        %v828 = vpop.permute.xlu0 %827
        %829 = vrot.lane.b32.xlu0 %v758, 100
        %v830 = vpop.permute.xlu0 %829
        %vm831 = vcmask 818176
        %v832 = vsel %vm831, %v828, %v830
        %834 = vst.msk [vmem:[#allocation3 + $0x8] sm:$0xff] %vm790, %v832
        %835 = vrot.lane.b32.xlu0 %v758, 98
        %v836 = vpop.permute.xlu0 %835
        %838 = vst.msk [vmem:[#allocation3 + $0x8] sm:$0xff] %vm800, %v836
        %v839 = vld [vmem:[%s7] sm:$0xf]
        %v840 = vld [vmem:[#allocation3] sm:$0xff]
        %v841 = vld [vmem:[#allocation3 + $0x8] sm:$0xff]
        %v842 = vld [vmem:[%s8] sm:$0xf]
        %844 = vset.pattern.permute.xlu0 0
        %845 = vperm.xlu0 %844, %v842
        %v846 = vpop.permute.xlu0 %845
        %vm848 = vcmask 64512
        %v850 = vsel %vm848, %v839, 0
        %852 = vmatprep.subr.mxu0 %v841
        %853 = vmatpush1.msra.mxu0 %v840
        %854 = vmatprep.subr.mxu0 0.0
        %855 = vmatpush1.msra.mxu0 0.0
        %856 = vmatprep.subr.mxu0 0.0
        %857 = vmatpush1.msra.mxu0 0.0
        %858 = vmatprep.subr.mxu0 0.0
        %859 = vmatpush1.msra.mxu0 0.0
        %860 = vmatprep.subr.mxu0 0.0
        %861 = vmatpush1.msra.mxu0 0.0
        %862 = vmatprep.subr.mxu0 0.0
        %863 = vmatpush1.msra.mxu0 0.0
        %864 = vmatprep.subr.mxu0 0.0
        %865 = vmatpush1.msra.mxu0 0.0
        %866 = vmatprep.subr.mxu0 0.0
        %867 = vmatpush1.msra.mxu0 0.0
        %868 = vmatprep.subr.mxu0 0.0
        %869 = vmatpush1.msra.mxu0 0.0
        %870 = vmatprep.subr.mxu0 0.0
        %871 = vmatpush1.msra.mxu0 0.0
        %872 = vmatprep.subr.mxu0 0.0
        %873 = vmatpush1.msra.mxu0 0.0
        %874 = vmatprep.subr.mxu0 0.0
        %875 = vmatpush1.msra.mxu0 0.0
        %876 = vmatprep.subr.mxu0 0.0
        %877 = vmatpush1.msra.mxu0 0.0
        %878 = vmatprep.subr.mxu0 0.0
        %879 = vmatpush1.msra.mxu0 0.0
        %880 = vmatprep.subr.mxu0 0.0
        %881 = vmatpush1.msra.mxu0 0.0
        %882 = vmatprep.subr.mxu0 0.0
        %883 = vmatpush1.msra.mxu0 0.0
        %884 = vmatprep.subr.mxu0 0.0
        %885 = vmatpush1.msra.mxu0 0.0
        %886 = vmatprep.subr.mxu0 0.0
        %887 = vmatpush1.msra.mxu0 0.0
        %888 = vmatprep.subr.mxu0 0.0
        %889 = vmatpush1.msra.mxu0 0.0
        %890 = vmatprep.subr.mxu0 0.0
        %891 = vmatpush1.msra.mxu0 0.0
        %892 = vmatprep.subr.mxu0 0.0
        %893 = vmatpush1.msra.mxu0 0.0
        %894 = vmatprep.subr.mxu0 0.0
        %895 = vmatpush1.msra.mxu0 0.0
        %896 = vmatprep.subr.mxu0 0.0
        %897 = vmatpush1.msra.mxu0 0.0
        %898 = vmatprep.subr.mxu0 0.0
        %899 = vmatpush1.msra.mxu0 0.0
        %900 = vmatprep.subr.mxu0 0.0
        %901 = vmatpush1.msra.mxu0 0.0
        %902 = vmatprep.subr.mxu0 0.0
        %903 = vmatpush1.msra.mxu0 0.0
        %904 = vmatprep.subr.mxu0 0.0
        %905 = vmatpush1.msra.mxu0 0.0
        %906 = vmatprep.subr.mxu0 0.0
        %907 = vmatpush1.msra.mxu0 0.0
        %908 = vmatprep.subr.mxu0 0.0
        %909 = vmatpush1.msra.mxu0 0.0
        %910 = vmatprep.subr.mxu0 0.0
        %911 = vmatpush1.msra.mxu0 0.0
        %912 = vmatprep.subr.mxu0 0.0
        %913 = vmatpush1.msra.mxu0 0.0
        %914 = vmatprep.subr.mxu0 0.0
        %915 = vmatpush1.msra.mxu0 0.0
        %916 = vmatprep.mubr.f32.mxu0 0.0
        %917 = vmatmul.mubr.f32.gmra.mrb[0].mxu0 %v850
        %v918 = vpop.f32.mrb[0].mxu0
        %v919 = vadd.f32 %v846, %v918
        %v920 = vpop.f32.mrb[0].mxu0
        %v921 = vadd.f32 %v846, %v920
        %922 = vdwg.mxu0
        %v924 = vadd.f32 %v919, %v331
        %v925 = vadd.f32 %v921, %v340
        %v928 = vcombine.low %v924, %v925
        %930 = vst [vmem:[%s325] sm:$0xff] %v928
        %s931 = sand.u32 %s225, 1
        %s932 = scalar_lea.sflag [#allocation5], %s931
        %s933 = sand.u32 %s225, 1
        %s934 = smul.addr %s933, 8
        %s935 = scalar_lea.vmem [#allocation4], %s934
        // Predicated region
        $region57: #{tpu_custom_call.1} parent=55 // pred_check
          %p936 = pneg %p235
        $region58: #{tpu_custom_call.1} parent=55 // pred_check_branch
          %938 = sbr.rel (%p936) target = $region60
        $region59: #{tpu_custom_call.1} parent=55 // pred_region
          %s940 = ssub.s32 128, 128
          %941 = vsyncadd %s932, %s940
          %s942 = smul.addr %s23, 2
          %s943 = smul.addr %s942, 64
          %s944 = scalar_lea.hbm %s9, %s943
          %s946 = sshll.u32 %s935, 4
          %s947 = int_to_ptr.vmem [resolvable:$true] %s946
          %949 = dma.vmem_to_hbm [thread:$0]  %s947, 128, %s944, %s932
        $region60: #{tpu_custom_call.1} parent=55 // pred_fallthru
          _
      $region56: #{tpu_custom_call.1} parent=5 // pred_fallthru
        _
      %p950 = scmp.le.s32.totalorder 2, %s18
      // Predicated region
      $region61: #{tpu_custom_call.1} parent=5 // pred_check
        %p951 = pneg %p950
      $region62: #{tpu_custom_call.1} parent=5 // pred_check_branch
        %953 = sbr.rel (%p951) target = $region64
      $region63: #{tpu_custom_call.1} parent=5 // pred_region
        %s954 = ssub.s32 %s18, 2
        // Predicated region
        $region65: #{tpu_custom_call.1} parent=63 // pred_check
          %p955 = pneg %p241
        $region66: #{tpu_custom_call.1} parent=63 // pred_check_branch
          %957 = sbr.rel (%p955) target = $region68
        $region67: #{tpu_custom_call.1} parent=63 // pred_region
          %s958 = sand.u32 %s226, 1
          %s959 = scalar_lea.sflag [#allocation5], %s958
          %s960 = sand.u32 %s226, 1
          %s961 = smul.addr %s960, 8
          %s962 = scalar_lea.vmem [#allocation4], %s961
          %963 = dma.done %s959, 128
        $region68: #{tpu_custom_call.1} parent=63 // pred_fallthru
          _
      $region64: #{tpu_custom_call.1} parent=5 // pred_fallthru
        _
    $region6: #{tpu_custom_call.1} parent=1 // loop_footer
      %s22 = sadd.s32 1, %s18
    $region7: #{tpu_custom_call.1} parent=1 // loop_footer_branch
      %17 = sbr.rel target = $region3
    $region8: #{tpu_custom_call.1} parent=1 // loop_exit
      _
    %964 = vsyncpa [#allocation5], 1
    %s965 = scalar_lea.sflag [#allocation5], 1
    %966 = vsyncpa %s965, 1

</llo_original>
